<compile_context>
chip_gen: v6e
topology: v6e:2x2x1
jax: 0.10.0
libtpu: 0.0.40
codegen_flags: <defaults>
</compile_context>

<pallas_src>
import numpy as np
import jax
import jax.numpy as jnp
from jax.experimental import pallas as pl
from jax.experimental.pallas import tpu as pltpu


def _rbf_bank_kernel(mus_ref, coef_ref, data_ref, out_ref):
    # data_ref: (TILE_R, 1, TILE_C)  mus/coef: (1, K, 1)  out: (TILE_R, K, TILE_C)
    x = data_ref[...].astype(jnp.float32)
    adj = x - mus_ref[...]                        # broadcast -> (TILE_R, K, TILE_C)
    out_ref[...] = jnp.exp(coef_ref[...] * adj * adj).astype(out_ref.dtype)


def _largest_divisor(n, cap, multiple=1):
    """Largest divisor of n that is <= cap and a multiple of `multiple`, else None."""
    for t in range(min(cap, n), 0, -1):
        if n % t == 0 and t % multiple == 0:
            return t
    return None


def rbf_kernel_bank(data, mus, sigmas, dim=1):
    """Pallas implementation of RbfKernelBank.forward."""
    mus = jnp.asarray(mus, jnp.float32)
    sigmas = jnp.asarray(sigmas, jnp.float32)
    K = int(mus.shape[0])
    coef = -0.5 / (sigmas * sigmas)               # per-kernel scale: no in-kernel divides

    orig_shape = data.shape
    ndim_out = len(orig_shape) + 1
    dim_norm = dim % ndim_out

    # Flatten so everything *after* the inserted K axis lands on the lane axis
    # (lane-dense output) and everything before it is the leading axis.
    R = int(np.prod(orig_shape[:dim_norm], dtype=np.int64)) if dim_norm > 0 else 1
    C = int(np.prod(orig_shape[dim_norm:], dtype=np.int64)) if dim_norm < len(orig_shape) else 1
    data3d = data.reshape(R, 1, C)
    mus_b = mus.reshape(1, K, 1)
    coef_b = coef.reshape(1, K, 1)

    # Tile selection: lane tile a multiple of 128 (or full C); leading tile
    # sized so double-buffered in/out blocks stay well under VMEM limits
    # (including v7x's 64 MiB).
    tile_c = _largest_divisor(C, 512, multiple=128) or C
    budget_elems = 32768                          # ~ tile_r * tile_c upper bound
    tile_r = _largest_divisor(R, max(1, budget_elems // tile_c)) or R

    grid = (R // tile_r, C // tile_c)

    out = pl.pallas_call(
        _rbf_bank_kernel,
        out_shape=jax.ShapeDtypeStruct((R, K, C), data.dtype),
        grid=grid,
        in_specs=[
            pl.BlockSpec((1, K, 1), lambda i, j: (0, 0, 0)),            # mus
            pl.BlockSpec((1, K, 1), lambda i, j: (0, 0, 0)),            # coef
            pl.BlockSpec((tile_r, 1, tile_c), lambda i, j: (i, 0, j)),  # data
        ],
        out_specs=pl.BlockSpec((tile_r, K, tile_c), lambda i, j: (i, 0, j)),
        compiler_params=pltpu.CompilerParams(
            dimension_semantics=("parallel", "parallel")),
    )(mus_b, coef_b, data3d)

    # Pure metadata reshape: (R, K, C) is already the final contiguous layout.
    final_shape = orig_shape[:dim_norm] + (K,) + orig_shape[dim_norm:]
    return out.reshape(final_shape)


def _reference(data, mus, sigmas, dim):
    # Pure-JAX reference mirroring the torch forward op-for-op.
    ndim = data.ndim + 1
    dim_norm = dim % ndim
    data_e = jnp.expand_dims(data, dim_norm)
    bshape = [1] * ndim
    bshape[dim_norm] = -1
    mus_b = jnp.asarray(mus, data.dtype).reshape(bshape)
    sigmas_b = jnp.asarray(sigmas, data.dtype).reshape(bshape)
    adj = data_e - mus_b
    return jnp.exp(-0.5 * adj * adj / sigmas_b / sigmas_b)


if __name__ == "__main__":
    # RbfKernelBank.from_strs defaults (as instantiated by ConvKNRMModel).
    mus = np.array([-0.9, -0.7, -0.5, -0.3, -0.1, 0.1, 0.3, 0.5, 0.7, 0.9, 1.0],
                   dtype=np.float32)
    sigmas = np.array([0.1] * 10 + [0.001], dtype=np.float32)
    dim = 1  # ConvKNRM: simmats (B, CH, Q, D) -> kernels (B, K, CH, Q, D)

    # ConvKNRM-like similarity tensor: batch=2, channels=3x3 conv views=9,
    # qlen=8, dlen=16  ->  lane axis C = 9*8*16 = 1152 (multiple of 128).
    key = jax.random.PRNGKey(0)
    data = jax.random.uniform(key, (2, 9, 8, 16), dtype=jnp.float32,
                              minval=-1.0, maxval=1.0)

    out = rbf_kernel_bank(data, mus, sigmas, dim=dim)
    out = jax.block_until_ready(out)

    ref = _reference(data, mus, sigmas, dim)
    assert out.shape == ref.shape, (out.shape, ref.shape)
    np.testing.assert_allclose(np.asarray(out), np.asarray(ref),
                               rtol=1e-5, atol=1e-5)
    print("KERNEL_OK")
</pallas_src>

<mosaic_0001>
module attributes {stable_mosaic.version = 11 : i64} {
  func.func @_rbf_bank_kernel(%arg0: i32, %arg1: i32, %arg2: memref<1x11x1xf32, #tpu.memory_space<vmem>>, %arg3: memref<1x11x1xf32, #tpu.memory_space<vmem>>, %arg4: memref<2x1x384xf32, #tpu.memory_space<vmem>>, %arg5: memref<2x11x384xf32, #tpu.memory_space<vmem>>) attributes {dimension_semantics = [#tpu.dimension_semantics<parallel>, #tpu.dimension_semantics<parallel>], iteration_bounds = array<i64: 1, 3>, scalar_prefetch = 0 : i64, scratch_operands = 0 : i64, tpu.core_type = #tpu.core_type<tc>, window_params = [{pipeline_mode = #tpu.pipeline_mode<synchronous>, transform_indices = @transform_0, window_bounds = array<i64: 1, 11, 1>}, {pipeline_mode = #tpu.pipeline_mode<synchronous>, transform_indices = @transform_1, window_bounds = array<i64: 1, 11, 1>}, {transform_indices = @transform_2, window_bounds = array<i64: 2, 1, 384>}, {transform_indices = @transform_3, window_bounds = array<i64: 2, 11, 384>}]} {
    %c0 = arith.constant 0 : index
    %c0_0 = arith.constant 0 : index
    %c0_1 = arith.constant 0 : index
    %0 = vector.load %arg4[%c0, %c0_0, %c0_1] : memref<2x1x384xf32, #tpu.memory_space<vmem>>, vector<2x1x384xf32>
    %c0_2 = arith.constant 0 : index
    %c0_3 = arith.constant 0 : index
    %c0_4 = arith.constant 0 : index
    %1 = vector.load %arg2[%c0_2, %c0_3, %c0_4] : memref<1x11x1xf32, #tpu.memory_space<vmem>>, vector<1x11x1xf32>
    %2 = vector.broadcast %0 : vector<2x1x384xf32> to vector<2x11x384xf32>
    %3 = vector.broadcast %1 : vector<1x11x1xf32> to vector<2x11x384xf32>
    %4 = arith.subf %2, %3 : vector<2x11x384xf32>
    %c0_5 = arith.constant 0 : index
    %c0_6 = arith.constant 0 : index
    %c0_7 = arith.constant 0 : index
    %5 = vector.load %arg3[%c0_5, %c0_6, %c0_7] : memref<1x11x1xf32, #tpu.memory_space<vmem>>, vector<1x11x1xf32>
    %6 = vector.broadcast %5 : vector<1x11x1xf32> to vector<2x11x384xf32>
    %7 = arith.mulf %6, %4 : vector<2x11x384xf32>
    %8 = arith.mulf %7, %4 : vector<2x11x384xf32>
    %9 = math.exp %8 : vector<2x11x384xf32>
    %c0_8 = arith.constant 0 : index
    %c0_9 = arith.constant 0 : index
    %c0_10 = arith.constant 0 : index
    %10 = vector.load %arg5[%c0_8, %c0_9, %c0_10] : memref<2x11x384xf32, #tpu.memory_space<vmem>>, vector<2x11x384xf32>
    tpu.vector_store %arg5[%c0_8, %c0_9, %c0_10], %9 {strides = array<i32>} : memref<2x11x384xf32, #tpu.memory_space<vmem>>, vector<2x11x384xf32>,
    return
  }
  func.func @transform_0(%arg0: i32, %arg1: i32) -> (i32, i32, i32) {
    %c0_i32 = arith.constant 0 : i32
    %c0_i32_0 = arith.constant 0 : i32
    %c0_i32_1 = arith.constant 0 : i32
    %c0_i32_2 = arith.constant 0 : i32
    return %c0_i32, %c0_i32_0, %c0_i32_1 : i32, i32, i32
  }
  func.func @transform_1(%arg0: i32, %arg1: i32) -> (i32, i32, i32) {
    %c0_i32 = arith.constant 0 : i32
    %c0_i32_0 = arith.constant 0 : i32
    %c0_i32_1 = arith.constant 0 : i32
    %c0_i32_2 = arith.constant 0 : i32
    return %c0_i32, %c0_i32_0, %c0_i32_1 : i32, i32, i32
  }
  func.func @transform_2(%arg0: i32, %arg1: i32) -> (i32, i32, i32) {
    %c0_i32 = arith.constant 0 : i32
    %c0_i32_0 = arith.constant 0 : i32
    return %arg0, %c0_i32, %arg1 : i32, i32, i32
  }
  func.func @transform_3(%arg0: i32, %arg1: i32) -> (i32, i32, i32) {
    %c0_i32 = arith.constant 0 : i32
    %c0_i32_0 = arith.constant 0 : i32
    return %arg0, %c0_i32, %arg1 : i32, i32, i32
  }
}

</mosaic_0001>

<llo_original>
// kernel: tpu_custom_call.1
$region0: #{tpu_custom_call.1}
  #allocation0 [shape = 'u32[]', space=smem, size = 0x4, offset = 0x4, fixed_abs, tag = 'smem constant byte address 0x4 - core index']
  #allocation1 [shape = 'u32[144,128]{1,0:T(1,128)}', space=vmem, size = 0x12000, scoped, tag = 'internal scratch']
  %s0 = inlined_call_operand.vmem [shape: f32[1,11,1], index: 0, kind: input, shape index: {}]
  %s1 = inlined_call_operand.vmem [shape: f32[1,11,1], index: 1, kind: input, shape index: {}]
  %s2 = inlined_call_operand.vmem [shape: f32[2,1,1152], index: 2, kind: input, shape index: {}]
  %s3 = inlined_call_operand.vmem [shape: f32[2,11,1152], index: 3, kind: output, shape index: {}]
  %s4 = sld [smem:[#allocation0]]
  $region98: #{tpu_custom_call.1} parent=0
    _
  %s6 = ssub.s32 1, %s4
  %s7 = scalar_select 0, %s6, %s4
  $region1: #{tpu_custom_call.1} parent=0
    #allocation2 [shape = 'u8[6144]{0}', space=vmem, size = 0x1800, scoped, tag = 'input window, operand 2']
    #allocation3 [shape = 'u8[98304]{0}', space=vmem, size = 0x18000, scoped, tag = 'output window, operand 0']
    loop: start=0, step=1, limit=5
    $region2: #{tpu_custom_call.1} parent=1 // loop_pre_header
      _
    $region3: #{tpu_custom_call.1} parent=1 // loop_header
      %s9 = sphi 0, %s13
      %p10 = scmp.ge.s32.totalorder %s9, 5
      %s16 = sphi 0, %s28
      %s17 = sphi 0, %s24
      %s18 = sphi 0, %s16
      %s19 = sphi 0, %s17
      %s20 = sphi 0, %s18
      %s21 = sphi 0, %s19
      %s29 = sphi 0, %s29
      %s31 = sphi 0, %s29
      %s32 = sphi 0, %s31
      %s46 = sphi 0, %s32
      %s50 = sphi 0, %s50
      %s52 = sphi 0, %s50
      %s53 = sphi 0, %s52
      %s67 = sphi 0, %s53
      %s75 = sphi 0, %s77
      %s78 = sphi 0, %s75
      %s79 = sphi 0, %s78
      %s95 = sphi 0, %s79
      %s103 = sphi 0, %s105
      %s106 = sphi 0, %s103
      %s107 = sphi 0, %s106
      %s123 = sphi 0, %s107
    $region4: #{tpu_custom_call.1} parent=1 // loop_header_branch
      %12 = sbr.rel (%p10) target = $region8
    $region5: #{tpu_custom_call.1} parent=1 // loop_body
      %s14 = ssub.s32 %s9, 1
      %s15 = ssub.s32 %s9, 2
      %s22 = sadd.s32 1, %s17
      %p23 = scmp.ge.s32.totalorder %s22, 3
      %s24 = scalar_select %p23, 0, %s22
      %s25 = sadd.s32 1, %s16
      %s26 = scalar_select %p23, %s25, %s16
      %p27 = scmp.ge.s32.totalorder %s26, 1
      %s28 = scalar_select %p27, 0, %s26
      %s30 = sadd.s32 %s29, 1
      %p33 = scmp.eq.s32.totalorder %s9, 2
      %p34 = scmp.ne.s32.totalorder %s29, %s31
      %p35 = scmp.eq.s32.totalorder %s9, 0
      %p36 = por %p34, %p35
      %p37 = scmp.ne.s32.totalorder %s29, %s31
      %p38 = scmp.eq.s32.totalorder %s14, 2
      %p39 = por %p37, %p38
      %p40 = scmp.ne.s32.totalorder %s31, %s32
      %p41 = scmp.eq.s32.totalorder %s14, 0
      %p42 = por %p40, %p41
      %p43 = scmp.ne.s32.totalorder %s31, %s32
      %p44 = scmp.eq.s32.totalorder %s15, 2
      %p45 = por %p43, %p44
      %p47 = scmp.ne.s32.totalorder %s32, %s46
      %p48 = scmp.eq.s32.totalorder %s15, 0
      %p49 = por %p47, %p48
      %s51 = sadd.s32 %s50, 1
      %p54 = scmp.eq.s32.totalorder %s9, 2
      %p55 = scmp.ne.s32.totalorder %s50, %s52
      %p56 = scmp.eq.s32.totalorder %s9, 0
      %p57 = por %p55, %p56
      %p58 = scmp.ne.s32.totalorder %s50, %s52
      %p59 = scmp.eq.s32.totalorder %s14, 2
      %p60 = por %p58, %p59
      %p61 = scmp.ne.s32.totalorder %s52, %s53
      %p62 = scmp.eq.s32.totalorder %s14, 0
      %p63 = por %p61, %p62
      %p64 = scmp.ne.s32.totalorder %s52, %s53
      %p65 = scmp.eq.s32.totalorder %s15, 2
      %p66 = por %p64, %p65
      %p68 = scmp.ne.s32.totalorder %s53, %s67
      %p69 = scmp.eq.s32.totalorder %s15, 0
      %p70 = por %p68, %p69
      %s71 = ssub.s32 %s16, %s28
      %s72 = ssub.s32 %s17, %s24
      %s73 = sor.u32 %s71, %s72
      %p74 = scmp.eq.s32.totalorder %s73, 0
      %s76 = sadd.s32 %s75, 1
      %s77 = scalar_select %p74, %s75, %s76
      %p80 = pneg %p74
      %p81 = scmp.eq.s32.totalorder %s9, 2
      %p82 = por %p80, %p81
      %p83 = scmp.ne.s32.totalorder %s75, %s78
      %p84 = scmp.eq.s32.totalorder %s9, 0
      %p85 = por %p83, %p84
      %p86 = scmp.ne.s32.totalorder %s75, %s78
      %p87 = scmp.eq.s32.totalorder %s14, 2
      %p88 = por %p86, %p87
      %p89 = scmp.ne.s32.totalorder %s78, %s79
      %p90 = scmp.eq.s32.totalorder %s14, 0
      %p91 = por %p89, %p90
      %p92 = scmp.ne.s32.totalorder %s78, %s79
      %p93 = scmp.eq.s32.totalorder %s15, 2
      %p94 = por %p92, %p93
      %p96 = scmp.ne.s32.totalorder %s79, %s95
      %p97 = scmp.eq.s32.totalorder %s15, 0
      %p98 = por %p96, %p97
      %s99 = ssub.s32 %s16, %s28
      %s100 = ssub.s32 %s17, %s24
      %s101 = sor.u32 %s99, %s100
      %p102 = scmp.eq.s32.totalorder %s101, 0
      %s104 = sadd.s32 %s103, 1
      %s105 = scalar_select %p102, %s103, %s104
      %p108 = pneg %p102
      %p109 = scmp.eq.s32.totalorder %s9, 2
      %p110 = por %p108, %p109
      %p111 = scmp.ne.s32.totalorder %s103, %s106
      %p112 = scmp.eq.s32.totalorder %s9, 0
      %p113 = por %p111, %p112
      %p114 = scmp.ne.s32.totalorder %s103, %s106
      %p115 = scmp.eq.s32.totalorder %s14, 2
      %p116 = por %p114, %p115
      %p117 = scmp.ne.s32.totalorder %s106, %s107
      %p118 = scmp.eq.s32.totalorder %s14, 0
      %p119 = por %p117, %p118
      %p120 = scmp.ne.s32.totalorder %s106, %s107
      %p121 = scmp.eq.s32.totalorder %s15, 2
      %p122 = por %p120, %p121
      %p124 = scmp.ne.s32.totalorder %s107, %s123
      %p125 = scmp.eq.s32.totalorder %s15, 0
      %p126 = por %p124, %p125
      %p127 = scmp.le.s32.totalorder 1, %s9
      %p128 = scmp.lt.s32.totalorder %s9, 4
      %p129 = pnand %p127, %p128
      %p130 = pneg %p129
      // Predicated region
      $region9: #{tpu_custom_call.1} parent=5 // pred_check
        _
      $region10: #{tpu_custom_call.1} parent=5 // pred_check_branch
        %132 = sbr.rel (%p129) target = $region12
      $region11: #{tpu_custom_call.1} parent=5 // pred_region
        %s133 = ssub.s32 %s9, 1
        // Predicated region
        $region13: #{tpu_custom_call.1} parent=11 // pred_check
          %p134 = pneg %p42
        $region14: #{tpu_custom_call.1} parent=11 // pred_check_branch
          %136 = sbr.rel (%p134) target = $region16
        $region15: #{tpu_custom_call.1} parent=11 // pred_region
          _
        $region16: #{tpu_custom_call.1} parent=11 // pred_fallthru
          _
        // Predicated region
        $region17: #{tpu_custom_call.1} parent=11 // pred_check
          %p137 = pneg %p63
        $region18: #{tpu_custom_call.1} parent=11 // pred_check_branch
          %139 = sbr.rel (%p137) target = $region20
        $region19: #{tpu_custom_call.1} parent=11 // pred_region
          _
        $region20: #{tpu_custom_call.1} parent=11 // pred_fallthru
          _
      $region12: #{tpu_custom_call.1} parent=5 // pred_fallthru
        _
      %p140 = scmp.lt.s32.totalorder %s9, 3
      // Predicated region
      $region21: #{tpu_custom_call.1} parent=5 // pred_check
        %p141 = pneg %p140
      $region22: #{tpu_custom_call.1} parent=5 // pred_check_branch
        %143 = sbr.rel (%p141) target = $region24
      $region23: #{tpu_custom_call.1} parent=5 // pred_region
        // Predicated region
        $region25: #{tpu_custom_call.1} parent=23 // pred_check
          %p144 = pneg %p85
        $region26: #{tpu_custom_call.1} parent=23 // pred_check_branch
          %146 = sbr.rel (%p144) target = $region28
        $region27: #{tpu_custom_call.1} parent=23 // pred_region
          %s147 = sand.u32 %s75, 1
          %s148 = sand.u32 %s75, 1
          %s149 = smul.addr %s148, 6
          %s150 = scalar_lea.vmem [#allocation2], %s149
          %s151 = smul.u32 2, %s16
          %s152 = smul.u32 3, %s17
          %s153 = smul.addr %s151, 9
          %s154 = sadd.s32 %s152, %s153
          %s155 = scalar_lea.vmem %s2, %s154
          // Predicated region
          $region29: #{tpu_custom_call.1} parent=27 // pred_check
            _
          $region30: #{tpu_custom_call.1} parent=27 // pred_check_branch
            %157 = sbr.rel (0) target = $region32
          $region31: #{tpu_custom_call.1} parent=27 // pred_region
            // Predicated region
            $region33: #{tpu_custom_call.1} parent=31 // pred_check
              _
            $region34: #{tpu_custom_call.1} parent=31 // pred_check_branch
              %159 = sbr.rel target = $region36
            $region35: #{tpu_custom_call.1} parent=31 // pred_region
              // Predicated region
              $region48: #{tpu_custom_call.1} parent=35 // pred_check
                _
              $region49: #{tpu_custom_call.1} parent=35 // pred_check_branch
                %177 = sbr.rel (0) target = $region51
              $region50: #{tpu_custom_call.1} parent=35 // pred_region
                %s179 = ssub.s32 8, 1
                loop: start=0, step=1, limit=1
                $region52: #{tpu_custom_call.1} parent=50 // loop_pre_header
                  _
                $region53: #{tpu_custom_call.1} parent=50 // loop_header
                  %s181 = sphi 0, %s185
                  %p182 = scmp.ge.s32.totalorder %s181, 1
                  %s186 = sphi %s155, %s155
                  %s187 = sphi %s150, %s150
                $region54: #{tpu_custom_call.1} parent=50 // loop_header_branch
                  %184 = sbr.rel (%p182) target = $region58
                $region55: #{tpu_custom_call.1} parent=50 // loop_body
                  %v188 = vld [vmem:[%s186] sm:%s179]
                  %189 = vst [vmem:[%s187] sm:%s179] %v188
                  %v190 = vld [vmem:[%s186 + $0x9] sm:%s179]
                  %191 = vst [vmem:[%s187 + $0x3] sm:%s179] %v190
                $region56: #{tpu_custom_call.1} parent=50 // loop_footer
                  %s185 = sadd.s32 1, %s181
                $region57: #{tpu_custom_call.1} parent=50 // loop_footer_branch
                  %180 = sbr.rel target = $region53
                $region58: #{tpu_custom_call.1} parent=50 // loop_exit
                  _
              $region51: #{tpu_custom_call.1} parent=35 // pred_fallthru
                _
            $region36: #{tpu_custom_call.1} parent=31 // pred_fallthru
              _
            // Predicated region
            $region37: #{tpu_custom_call.1} parent=31 // pred_check
              _
            $region38: #{tpu_custom_call.1} parent=31 // pred_check_branch
              %161 = sbr.rel (0) target = $region40
            $region39: #{tpu_custom_call.1} parent=31 // pred_region
              %s163 = ssub.s32 8, 1
              loop: start=0, step=1, limit=1
              $region41: #{tpu_custom_call.1} parent=39 // loop_pre_header
                _
              $region42: #{tpu_custom_call.1} parent=39 // loop_header
                %s165 = sphi 0, %s169
                %p166 = scmp.ge.s32.totalorder %s165, 1
                %s170 = sphi %s155, %s155
                %s171 = sphi %s150, %s150
              $region43: #{tpu_custom_call.1} parent=39 // loop_header_branch
                %168 = sbr.rel (%p166) target = $region47
              $region44: #{tpu_custom_call.1} parent=39 // loop_body
                %v172 = vld [vmem:[%s170] sm:%s163]
                %173 = vst [vmem:[%s171] sm:%s163] %v172
                %v174 = vld [vmem:[%s170 + $0x9] sm:%s163]
                %175 = vst [vmem:[%s171 + $0x3] sm:%s163] %v174
              $region45: #{tpu_custom_call.1} parent=39 // loop_footer
                %s169 = sadd.s32 1, %s165
              $region46: #{tpu_custom_call.1} parent=39 // loop_footer_branch
                %164 = sbr.rel target = $region42
              $region47: #{tpu_custom_call.1} parent=39 // loop_exit
                _
            $region40: #{tpu_custom_call.1} parent=31 // pred_fallthru
              _
          $region32: #{tpu_custom_call.1} parent=27 // pred_fallthru
            _
          %192 = vnop
        $region28: #{tpu_custom_call.1} parent=23 // pred_fallthru
          _
      $region24: #{tpu_custom_call.1} parent=5 // pred_fallthru
        _
      %p193 = scmp.le.s32.totalorder 1, %s9
      %p194 = scmp.lt.s32.totalorder %s9, 4
      %p195 = pnand %p193, %p194
      %p196 = pneg %p195
      // Predicated region
      $region59: #{tpu_custom_call.1} parent=5 // pred_check
        _
      $region60: #{tpu_custom_call.1} parent=5 // pred_check_branch
        %198 = sbr.rel (%p195) target = $region62
      $region61: #{tpu_custom_call.1} parent=5 // pred_region
        %s199 = ssub.s32 %s9, 1
        %s200 = sand.u32 %s78, 1
        %s201 = sand.u32 %s78, 1
        %s202 = smul.addr %s201, 6
        %s203 = scalar_lea.vmem [#allocation2], %s202
        // Predicated region
        $region63: #{tpu_custom_call.1} parent=61 // pred_check
          %p204 = pneg %p91
        $region64: #{tpu_custom_call.1} parent=61 // pred_check_branch
          %206 = sbr.rel (%p204) target = $region66
        $region65: #{tpu_custom_call.1} parent=61 // pred_region
          _
        $region66: #{tpu_custom_call.1} parent=61 // pred_fallthru
          _
        %p207 = pneg %p42
        %p208 = pneg %p39
        %p209 = pneg %p63
        %p210 = pneg %p60
        %s211 = sand.u32 %s78, 1
        %s212 = sand.u32 %s78, 1
        %s213 = smul.addr %s212, 6
        %s214 = scalar_lea.vmem [#allocation2], %s213
        %p215 = pneg %p91
        %p216 = pneg %p88
        %p217 = pneg %p119
        %p218 = pneg %p116
        %s219 = sand.u32 %s106, 1
        %s220 = sand.u32 %s106, 1
        %s221 = smul.addr %s220, 96
        %s222 = scalar_lea.vmem [#allocation3], %s221
        %s223 = smul.u32 2, %s18
        %s224 = smul.u32 3, %s19
        %s225 = smul.u32 2, %s18
        %s226 = smul.u32 3, %s19
        %v227 = vld [vmem:[%s203] sm:$0x7]
        %v228 = vld [vmem:[%s203 + $0x3] sm:$0x7]
        %v229 = vld [vmem:[%s0] sm:$0xff]
        %v230 = vld [vmem:[%s0 + $0x8] sm:$0x7]
        %v233 = vlaneseq
        %v234 = vshrl.u32 %v233, 7
        %v235 = vsub.s32 0, %v234
        %v236 = vrot.slane %v227, %v235
        %v237 = vlaneseq
        %v238 = vshrl.u32 %v237, 7
        %v239 = vsub.s32 1, %v238
        %v240 = vrot.slane %v227, %v239
        %v241 = vlaneseq
        %v242 = vshrl.u32 %v241, 7
        %v243 = vsub.s32 2, %v242
        %v244 = vrot.slane %v227, %v243
        %v245 = vlaneseq
        %v246 = vshrl.u32 %v245, 7
        %v247 = vsub.s32 0, %v246
        %v248 = vrot.slane %v228, %v247
        %v249 = vlaneseq
        %v250 = vshrl.u32 %v249, 7
        %v251 = vsub.s32 1, %v250
        %v252 = vrot.slane %v228, %v251
        %v253 = vlaneseq
        %v254 = vshrl.u32 %v253, 7
        %v255 = vsub.s32 2, %v254
        %v256 = vrot.slane %v228, %v255
        %264 = vset.pattern.permute.xlu0 0
        %265 = vperm.xlu0 %264, %v229
        %v266 = vpop.permute.xlu0 %265
        %269 = vset.pattern.permute.xlu0 0
        %270 = vperm.xlu0 %269, %v230
        %v271 = vpop.permute.xlu0 %270
        %v273 = vsub.f32 %v236, %v266
        %v274 = vsub.f32 %v240, %v266
        %v275 = vsub.f32 %v244, %v266
        %v276 = vsub.f32 %v236, %v271
        %v277 = vsub.f32 %v240, %v271
        %v278 = vsub.f32 %v244, %v271
        %v279 = vsub.f32 %v248, %v266
        %v280 = vsub.f32 %v252, %v266
        %v281 = vsub.f32 %v256, %v266
        %v282 = vsub.f32 %v248, %v271
        %v283 = vsub.f32 %v252, %v271
        %v284 = vsub.f32 %v256, %v271
        %v285 = vld [vmem:[%s1] sm:$0xff]
        %v286 = vld [vmem:[%s1 + $0x8] sm:$0x7]
        %288 = vset.pattern.permute.xlu0 0
        %289 = vperm.xlu0 %288, %v285
        %v290 = vpop.permute.xlu0 %289
        %293 = vset.pattern.permute.xlu0 0
        %294 = vperm.xlu0 %293, %v286
        %v295 = vpop.permute.xlu0 %294
        %v297 = vmul.f32 %v290, %v273
        %v298 = vmul.f32 %v290, %v274
        %v299 = vmul.f32 %v290, %v275
        %v300 = vmul.f32 %v295, %v276
        %v301 = vmul.f32 %v295, %v277
        %v302 = vmul.f32 %v295, %v278
        %v303 = vmul.f32 %v290, %v279
        %v304 = vmul.f32 %v290, %v280
        %v305 = vmul.f32 %v290, %v281
        %v306 = vmul.f32 %v295, %v282
        %v307 = vmul.f32 %v295, %v283
        %v308 = vmul.f32 %v295, %v284
        %v309 = vmul.f32 %v297, %v273
        %v310 = vmul.f32 %v298, %v274
        %v311 = vmul.f32 %v299, %v275
        %v312 = vmul.f32 %v300, %v276
        %v313 = vmul.f32 %v301, %v277
        %v314 = vmul.f32 %v302, %v278
        %v315 = vmul.f32 %v303, %v279
        %v316 = vmul.f32 %v304, %v280
        %v317 = vmul.f32 %v305, %v281
        %v318 = vmul.f32 %v306, %v282
        %v319 = vmul.f32 %v307, %v283
        %v320 = vmul.f32 %v308, %v284
        %v321 = vmul.f32 %v309, 1.442695
        %v322 = vpow.pop %v321
        %v323 = vmul.f32 %v310, 1.442695
        %v324 = vpow.pop %v323
        %v325 = vmul.f32 %v311, 1.442695
        %v326 = vpow.pop %v325
        %v327 = vmul.f32 %v312, 1.442695
        %v328 = vpow.pop %v327
        %v329 = vmul.f32 %v313, 1.442695
        %v330 = vpow.pop %v329
        %v331 = vmul.f32 %v314, 1.442695
        %v332 = vpow.pop %v331
        %v333 = vmul.f32 %v315, 1.442695
        %v334 = vpow.pop %v333
        %v335 = vmul.f32 %v316, 1.442695
        %v336 = vpow.pop %v335
        %v337 = vmul.f32 %v317, 1.442695
        %v338 = vpow.pop %v337
        %v339 = vmul.f32 %v318, 1.442695
        %v340 = vpow.pop %v339
        %v341 = vmul.f32 %v319, 1.442695
        %v342 = vpow.pop %v341
        %v343 = vmul.f32 %v320, 1.442695
        %v344 = vpow.pop %v343
        %345 = vst [vmem:[%s222] sm:$0xff] %v322
        %346 = vst [vmem:[%s222 + $0x8] sm:$0xff] %v324
        %347 = vst [vmem:[%s222 + $0x10] sm:$0xff] %v326
        %348 = vst [vmem:[%s222 + $0x18] sm:$0x7] %v328
        %349 = vst [vmem:[%s222 + $0x20] sm:$0x7] %v330
        %350 = vst [vmem:[%s222 + $0x28] sm:$0x7] %v332
        %351 = vst [vmem:[%s222 + $0x30] sm:$0xff] %v334
        %352 = vst [vmem:[%s222 + $0x38] sm:$0xff] %v336
        %353 = vst [vmem:[%s222 + $0x40] sm:$0xff] %v338
        %354 = vst [vmem:[%s222 + $0x48] sm:$0x7] %v340
        %355 = vst [vmem:[%s222 + $0x50] sm:$0x7] %v342
        %356 = vst [vmem:[%s222 + $0x58] sm:$0x7] %v344
        %s357 = sand.u32 %s106, 1
        %s358 = sand.u32 %s106, 1
        %s359 = smul.addr %s358, 96
        %s360 = scalar_lea.vmem [#allocation3], %s359
        // Predicated region
        $region67: #{tpu_custom_call.1} parent=61 // pred_check
          %p361 = pneg %p116
        $region68: #{tpu_custom_call.1} parent=61 // pred_check_branch
          %363 = sbr.rel (%p361) target = $region70
        $region69: #{tpu_custom_call.1} parent=61 // pred_region
          %s364 = smul.u32 2, %s18
          %s365 = smul.u32 3, %s19
          %s366 = smul.addr %s364, 18
          %s367 = sadd.s32 %s365, %s366
          %s368 = smul.addr %s367, 8
          %s369 = scalar_lea.vmem %s3, %s368
          // Predicated region
          $region71: #{tpu_custom_call.1} parent=69 // pred_check
            _
          $region72: #{tpu_custom_call.1} parent=69 // pred_check_branch
            %371 = sbr.rel (0) target = $region74
          $region73: #{tpu_custom_call.1} parent=69 // pred_region
            // Predicated region
            $region75: #{tpu_custom_call.1} parent=73 // pred_check
              _
            $region76: #{tpu_custom_call.1} parent=73 // pred_check_branch
              %373 = sbr.rel (0) target = $region78
            $region77: #{tpu_custom_call.1} parent=73 // pred_region
              loop: start=0, step=1, limit=1
              $region79: #{tpu_custom_call.1} parent=77 // loop_pre_header
                _
              $region80: #{tpu_custom_call.1} parent=77 // loop_header
                %s375 = sphi 0, %s379
                %p376 = scmp.ge.s32.totalorder %s375, 1
                %s380 = sphi %s360, %s360
                %s381 = sphi %s369, %s369
              $region81: #{tpu_custom_call.1} parent=77 // loop_header_branch
                %378 = sbr.rel (%p376) target = $region85
              $region82: #{tpu_custom_call.1} parent=77 // loop_body
                %v382 = vld [vmem:[%s380] sm:$0xff]
                %383 = vst [vmem:[%s381] sm:$0xff] %v382
                %v384 = vld [vmem:[%s380 + $0x8] sm:$0xff]
                %385 = vst [vmem:[%s381 + $0x8] sm:$0xff] %v384
                %v386 = vld [vmem:[%s380 + $0x10] sm:$0xff]
                %387 = vst [vmem:[%s381 + $0x10] sm:$0xff] %v386
                %v388 = vld [vmem:[%s380 + $0x18] sm:$0xff]
                %389 = vst [vmem:[%s381 + $0x48] sm:$0xff] %v388
                %v390 = vld [vmem:[%s380 + $0x20] sm:$0xff]
                %391 = vst [vmem:[%s381 + $0x50] sm:$0xff] %v390
                %v392 = vld [vmem:[%s380 + $0x28] sm:$0xff]
                %393 = vst [vmem:[%s381 + $0x58] sm:$0xff] %v392
                %v394 = vld [vmem:[%s380 + $0x30] sm:$0xff]
                %395 = vst [vmem:[%s381 + $0x90] sm:$0xff] %v394
                %v396 = vld [vmem:[%s380 + $0x38] sm:$0xff]
                %397 = vst [vmem:[%s381 + $0x98] sm:$0xff] %v396
                %v398 = vld [vmem:[%s380 + $0x40] sm:$0xff]
                %399 = vst [vmem:[%s381 + $0xa0] sm:$0xff] %v398
                %v400 = vld [vmem:[%s380 + $0x48] sm:$0xff]
                %401 = vst [vmem:[%s381 + $0xd8] sm:$0xff] %v400
                %v402 = vld [vmem:[%s380 + $0x50] sm:$0xff]
                %403 = vst [vmem:[%s381 + $0xe0] sm:$0xff] %v402
                %v404 = vld [vmem:[%s380 + $0x58] sm:$0xff]
                %405 = vst [vmem:[%s381 + $0xe8] sm:$0xff] %v404
              $region83: #{tpu_custom_call.1} parent=77 // loop_footer
                %s379 = sadd.s32 1, %s375
              $region84: #{tpu_custom_call.1} parent=77 // loop_footer_branch
                %374 = sbr.rel target = $region80
              $region85: #{tpu_custom_call.1} parent=77 // loop_exit
                _
            $region78: #{tpu_custom_call.1} parent=73 // pred_fallthru
              _
            // Predicated region
            $region86: #{tpu_custom_call.1} parent=73 // pred_check
              _
            $region87: #{tpu_custom_call.1} parent=73 // pred_check_branch
              %407 = sbr.rel target = $region89
            $region88: #{tpu_custom_call.1} parent=73 // pred_region
              _
            $region89: #{tpu_custom_call.1} parent=73 // pred_fallthru
              _
          $region74: #{tpu_custom_call.1} parent=69 // pred_fallthru
            _
          %408 = vnop
        $region70: #{tpu_custom_call.1} parent=61 // pred_fallthru
          _
      $region62: #{tpu_custom_call.1} parent=5 // pred_fallthru
        _
      %p409 = scmp.le.s32.totalorder 2, %s9
      // Predicated region
      $region90: #{tpu_custom_call.1} parent=5 // pred_check
        %p410 = pneg %p409
      $region91: #{tpu_custom_call.1} parent=5 // pred_check_branch
        %412 = sbr.rel (%p410) target = $region93
      $region92: #{tpu_custom_call.1} parent=5 // pred_region
        %s413 = ssub.s32 %s9, 2
        // Predicated region
        $region94: #{tpu_custom_call.1} parent=92 // pred_check
          %p414 = pneg %p122
        $region95: #{tpu_custom_call.1} parent=92 // pred_check_branch
          %416 = sbr.rel (%p414) target = $region97
        $region96: #{tpu_custom_call.1} parent=92 // pred_region
          %s417 = sand.u32 %s107, 1
          %s418 = sand.u32 %s107, 1
          %s419 = smul.addr %s418, 96
          %s420 = scalar_lea.vmem [#allocation3], %s419
        $region97: #{tpu_custom_call.1} parent=92 // pred_fallthru
          _
      $region93: #{tpu_custom_call.1} parent=5 // pred_fallthru
        _
    $region6: #{tpu_custom_call.1} parent=1 // loop_footer
      %s13 = sadd.s32 1, %s9
    $region7: #{tpu_custom_call.1} parent=1 // loop_footer_branch
      %8 = sbr.rel target = $region3
    $region8: #{tpu_custom_call.1} parent=1 // loop_exit
      _

</llo_original>
